<compile_context>
chip_gen: v5e
topology: v5e:2x2
jax: 0.10.0
libtpu: 0.0.40
codegen_flags: <defaults>
</compile_context>

<pallas_src>
import functools

import jax
import jax.numpy as jnp
import numpy as np
from jax.experimental import pallas as pl
from jax.experimental.pallas import tpu as pltpu

_LANE = 128


def _round_up(x, m):
    return ((x + m - 1) // m) * m


# --------------------------------------------------------------------------- #
# Kernel
# --------------------------------------------------------------------------- #
def _gnn_kernel(a_ref, h_ref, wbig_ref, bbig_ref, bgi_ref, out_ref,
                *, step, Hp, mxu_dtype):
    """One batch tile: `step` GNN-cell iterations fully inside the kernel.

    a_ref   : (bt, n, 2n)   adjacency (in | out halves)
    h_ref   : (bt, n, Hp)   hidden state, lane-padded
    wbig_ref: (Hp, 9*Hp)    [Wzin | Wzout | Whh^T], gate blocks lane-aligned
    bbig_ref: (1, 9*Hp)     [c_in | c_out | b_hh]
    bgi_ref : (1, 3*Hp)     folded gi bias
    out_ref : (bt, n, Hp)
    """
    bt, n, _ = a_ref.shape
    rows = bt * n
    G = 3 * Hp

    # Loop-invariant: split adjacency ONCE per tile (no per-step concat).
    a = a_ref[...]
    a_in = a[:, :, :n].astype(mxu_dtype)
    a_out = a[:, :, n:2 * n].astype(mxu_dtype)

    w_big = wbig_ref[...].astype(mxu_dtype)              # (Hp, 9Hp)
    # Hoist bias broadcasts out of the step loop.
    b_big = jnp.broadcast_to(bbig_ref[...], (rows, 9 * Hp))
    b_gi = jnp.broadcast_to(bgi_ref[...], (rows, G))

    def one_step(h):                                      # h: (rows, Hp) f32
        # Single fused hidden-side matmul: Z_in | Z_out | gh.
        fused = jnp.dot(h.astype(mxu_dtype), w_big,
                        preferred_element_type=jnp.float32) + b_big
        z_in = fused[:, 0:G].reshape(bt, n, G).astype(mxu_dtype)
        z_out = fused[:, G:2 * G].reshape(bt, n, G).astype(mxu_dtype)
        gh = fused[:, 2 * G:]                             # (rows, 3Hp) f32

        # Message passing with the pre-split adjacency halves.
        gi = (jnp.einsum("bij,bjk->bik", a_in, z_in,
                         preferred_element_type=jnp.float32)
              + jnp.einsum("bij,bjk->bik", a_out, z_out,
                           preferred_element_type=jnp.float32))
        gi = gi.reshape(rows, G) + b_gi

        # All gate slices are 128-lane aligned (Hp is a multiple of 128).
        i_r, i_i, i_n = gi[:, :Hp], gi[:, Hp:2 * Hp], gi[:, 2 * Hp:]
        h_r, h_i, h_n = gh[:, :Hp], gh[:, Hp:2 * Hp], gh[:, 2 * Hp:]

        resetgate = jax.nn.sigmoid(i_r + h_r)
        inputgate = jax.nn.sigmoid(i_i + h_i)
        newgate = jnp.tanh(i_n + resetgate * h_n)
        return h - inputgate * (h - newgate)

    h = h_ref[...].reshape(rows, Hp).astype(jnp.float32)
    h = jax.lax.fori_loop(0, step, lambda _, hh: one_step(hh), h,
                          unroll=(step <= 4))
    out_ref[...] = h.reshape(bt, n, Hp).astype(out_ref.dtype)


# --------------------------------------------------------------------------- #
# Wrapper
# --------------------------------------------------------------------------- #
def _pad_gate_cols(m, H, Hp):
    """(R, 3H) -> (R, 3Hp): each H-wide gate block moved to a Hp-aligned slot."""
    out = jnp.zeros((m.shape[0], 3 * Hp), m.dtype)
    for g in range(3):
        out = out.at[:, g * Hp:g * Hp + H].set(m[:, g * H:(g + 1) * H])
    return out


def _pad_gate_vec(v, H, Hp):
    out = jnp.zeros((3 * Hp,), v.dtype)
    for g in range(3):
        out = out.at[g * Hp:g * Hp + H].set(v[g * H:(g + 1) * H])
    return out


def _pad_rows(m, Hp):
    return jnp.zeros((Hp, m.shape[1]), m.dtype).at[:m.shape[0], :].set(m)


@functools.partial(jax.jit, static_argnames=("step", "block_b", "mxu_dtype"))
def gnn_forward(A, hidden, params, step=1, block_b=None, mxu_dtype=jnp.bfloat16):
    """GNN forward. A: (B, n, 2n) f32, hidden: (B, n, H) f32."""
    B, n, H = hidden.shape
    assert A.shape == (B, n, 2 * n)
    Hp = _round_up(H, _LANE)
    G = 3 * Hp

    # ---- fold all linears / biases once, lane-aligned per gate -------------
    w_ih = params["w_ih"]                                 # (3H, 2H)
    g_in = w_ih[:, :H].T                                  # (H, 3H)
    g_out = w_ih[:, H:2 * H].T                            # (H, 3H)
    w_zin = params["w_edge_in"].T @ g_in                  # (H, 3H)
    w_zout = params["w_edge_out"].T @ g_out               # (H, 3H)
    w_hh_t = params["w_hh"].T                             # (H, 3H)

    w_big = jnp.concatenate(
        [_pad_rows(_pad_gate_cols(w_zin, H, Hp), Hp),
         _pad_rows(_pad_gate_cols(w_zout, H, Hp), Hp),
         _pad_rows(_pad_gate_cols(w_hh_t, H, Hp), Hp)], axis=1)        # (Hp, 9Hp)
    b_big = jnp.concatenate(
        [_pad_gate_vec(params["b_edge_in"] @ g_in, H, Hp),
         _pad_gate_vec(params["b_edge_out"] @ g_out, H, Hp),
         _pad_gate_vec(params["b_hh"], H, Hp)]).reshape(1, 9 * Hp)
    b_gi = _pad_gate_vec(params["b_iah"] @ g_in + params["b_oah"] @ g_out
                         + params["b_ih"], H, Hp).reshape(1, G)

    # ---- batch tiling --------------------------------------------------------
    if block_b is None:
        target_rows = 512                      # fill the MXU M dimension
        cap = max(1, min(B, target_rows // max(n, 1)))
        if B > 1:                              # >=2 tiles -> both v7x TCs busy
            cap = min(cap, -(-B // 2))
        block_b = 1
        for d in range(cap, 0, -1):            # prefer divisor of B (no pad)
            if B % d == 0:
                block_b = d
                break
        if block_b * 4 < cap:                  # pathological B: pad instead
            block_b = cap
    num_tiles = pl.cdiv(B, block_b)
    Bp = num_tiles * block_b

    # hidden is rebuilt anyway (lane padding), so batch padding is free here.
    hidden_p = jnp.zeros((Bp, n, Hp), hidden.dtype).at[:B, :, :H].set(hidden)
    if Bp != B:                                # rare fallback path
        A = jnp.pad(A, ((0, Bp - B), (0, 0), (0, 0)))

    cost = pl.CostEstimate(
        flops=step * (2 * Bp * n * Hp * 9 * Hp + 2 * 2 * Bp * n * n * G),
        transcendentals=step * 3 * Bp * n * Hp,
        bytes_accessed=4 * (A.size + 2 * hidden_p.size
                            + w_big.size + b_big.size + b_gi.size),
    )

    out = pl.pallas_call(
        functools.partial(_gnn_kernel, step=step, Hp=Hp, mxu_dtype=mxu_dtype),
        out_shape=jax.ShapeDtypeStruct((Bp, n, Hp), hidden.dtype),
        grid=(num_tiles,),
        in_specs=[
            pl.BlockSpec((block_b, n, 2 * n), lambda b: (b, 0, 0)),  # A
            pl.BlockSpec((block_b, n, Hp), lambda b: (b, 0, 0)),     # hidden
            pl.BlockSpec((Hp, 9 * Hp), lambda b: (0, 0)),            # fused W
            pl.BlockSpec((1, 9 * Hp), lambda b: (0, 0)),             # fused bias
            pl.BlockSpec((1, G), lambda b: (0, 0)),                  # gi bias
        ],
        out_specs=pl.BlockSpec((block_b, n, Hp), lambda b: (b, 0, 0)),
        compiler_params=pltpu.CompilerParams(
            dimension_semantics=("parallel",),
            vmem_limit_bytes=48 * 1024 * 1024,   # fits v7x's 64 MiB per-TC VMEM
        ),
        cost_estimate=cost,
    )(A, hidden_p, w_big, b_big, b_gi)

    return out[:B, :, :H]


# --------------------------------------------------------------------------- #
# Pure-JAX reference (mirrors the PyTorch module exactly)
# --------------------------------------------------------------------------- #
def _reference_forward(A, hidden, params, step=1):
    n = A.shape[1]
    H = hidden.shape[-1]
    for _ in range(step):
        eh_in = hidden @ params["w_edge_in"].T + params["b_edge_in"]
        eh_out = hidden @ params["w_edge_out"].T + params["b_edge_out"]
        input_in = jnp.matmul(A[:, :, :n], eh_in) + params["b_iah"]
        input_out = jnp.matmul(A[:, :, n:2 * n], eh_out) + params["b_oah"]
        inputs = jnp.concatenate([input_in, input_out], axis=2)
        gi = inputs @ params["w_ih"].T + params["b_ih"]
        gh = hidden @ params["w_hh"].T + params["b_hh"]
        i_r, i_i, i_n = gi[..., :H], gi[..., H:2 * H], gi[..., 2 * H:]
        h_r, h_i, h_n = gh[..., :H], gh[..., H:2 * H], gh[..., 2 * H:]
        resetgate = jax.nn.sigmoid(i_r + h_r)
        inputgate = jax.nn.sigmoid(i_i + h_i)
        newgate = jnp.tanh(i_n + resetgate * h_n)
        hidden = hidden - inputgate * (hidden - newgate)
    return hidden


def init_params(key, hidden_size):
    H = hidden_size
    ks = jax.random.split(key, 10)
    scale = 1.0 / np.sqrt(H)
    return {
        "w_ih": jax.random.uniform(ks[0], (3 * H, 2 * H), jnp.float32, -scale, scale),
        "w_hh": jax.random.uniform(ks[1], (3 * H, H), jnp.float32, -scale, scale),
        "b_ih": jax.random.uniform(ks[2], (3 * H,), jnp.float32, -scale, scale),
        "b_hh": jax.random.uniform(ks[3], (3 * H,), jnp.float32, -scale, scale),
        "b_iah": jax.random.uniform(ks[4], (H,), jnp.float32, -scale, scale),
        "b_oah": jax.random.uniform(ks[5], (H,), jnp.float32, -scale, scale),
        "w_edge_in": jax.random.uniform(ks[6], (H, H), jnp.float32, -scale, scale),
        "b_edge_in": jax.random.uniform(ks[7], (H,), jnp.float32, -scale, scale),
        "w_edge_out": jax.random.uniform(ks[8], (H, H), jnp.float32, -scale, scale),
        "b_edge_out": jax.random.uniform(ks[9], (H,), jnp.float32, -scale, scale),
    }


if __name__ == "__main__":
    B, n, H = 2, 8, 32
    step = 2

    key = jax.random.PRNGKey(0)
    k_a, k_h, k_p = jax.random.split(key, 3)

    A = jax.random.uniform(k_a, (B, n, 2 * n), jnp.float32)
    hidden = jax.random.normal(k_h, (B, n, H), jnp.float32) * 0.1
    params = init_params(k_p, H)

    ref = _reference_forward(A, hidden, params, step=step)

    # f32 MXU feed: tight tolerance (validates the folding / padding algebra).
    out_f32 = jax.block_until_ready(
        gnn_forward(A, hidden, params, step=step, mxu_dtype=jnp.float32))
    np.testing.assert_allclose(np.asarray(out_f32), np.asarray(ref),
                               rtol=1e-4, atol=1e-5)

    # bf16 MXU feed (default / perf path): looser tolerance.
    out_bf16 = jax.block_until_ready(
        gnn_forward(A, hidden, params, step=step))
    np.testing.assert_allclose(np.asarray(out_bf16), np.asarray(ref),
                               rtol=3e-2, atol=3e-2)

    print("KERNEL_OK")
</pallas_src>

<mosaic_0001>
module attributes {stable_mosaic.version = 11 : i64} {
  func.func @_gnn_kernel(%arg0: i32, %arg1: memref<1x8x16xf32, #tpu.memory_space<vmem>>, %arg2: memref<1x8x128xf32, #tpu.memory_space<vmem>>, %arg3: memref<128x1152xf32, #tpu.memory_space<vmem>>, %arg4: memref<1x1152xf32, #tpu.memory_space<vmem>>, %arg5: memref<1x384xf32, #tpu.memory_space<vmem>>, %arg6: memref<1x8x128xf32, #tpu.memory_space<vmem>>) attributes {dimension_semantics = [#tpu.dimension_semantics<parallel>], iteration_bounds = array<i64: 2>, scalar_prefetch = 0 : i64, scratch_operands = 0 : i64, tpu.core_type = #tpu.core_type<tc>, window_params = [{transform_indices = @transform_0, window_bounds = array<i64: 1, 8, 16>}, {transform_indices = @transform_1, window_bounds = array<i64: 1, 8, 128>}, {pipeline_mode = #tpu.pipeline_mode<synchronous>, transform_indices = @transform_2, window_bounds = array<i64: 128, 1152>}, {pipeline_mode = #tpu.pipeline_mode<synchronous>, transform_indices = @transform_3, window_bounds = array<i64: 1, 1152>}, {pipeline_mode = #tpu.pipeline_mode<synchronous>, transform_indices = @transform_4, window_bounds = array<i64: 1, 384>}, {transform_indices = @transform_5, window_bounds = array<i64: 1, 8, 128>}]} {
    %c0 = arith.constant 0 : index
    %c0_0 = arith.constant 0 : index
    %c0_1 = arith.constant 0 : index
    %0 = vector.load %arg1[%c0, %c0_0, %c0_1] : memref<1x8x16xf32, #tpu.memory_space<vmem>>, vector<1x8x16xf32>
    %1 = vector.extract_strided_slice %0 {offsets = [0, 0, 0], sizes = [1, 8, 8], strides = [1, 1, 1]} : vector<1x8x16xf32> to vector<1x8x8xf32>
    %2 = vector.extract_strided_slice %0 {offsets = [0, 0, 8], sizes = [1, 8, 8], strides = [1, 1, 1]} : vector<1x8x16xf32> to vector<1x8x8xf32>
    %c0_2 = arith.constant 0 : index
    %c0_3 = arith.constant 0 : index
    %3 = vector.load %arg3[%c0_2, %c0_3] : memref<128x1152xf32, #tpu.memory_space<vmem>>, vector<128x1152xf32>
    %c0_4 = arith.constant 0 : index
    %c0_5 = arith.constant 0 : index
    %4 = vector.load %arg4[%c0_4, %c0_5] : memref<1x1152xf32, #tpu.memory_space<vmem>>, vector<1x1152xf32>
    %5 = vector.shape_cast %4 : vector<1x1152xf32> to vector<1x1152xf32>
    %6 = vector.broadcast %5 : vector<1x1152xf32> to vector<8x1152xf32>
    %c0_6 = arith.constant 0 : index
    %c0_7 = arith.constant 0 : index
    %7 = vector.load %arg5[%c0_6, %c0_7] : memref<1x384xf32, #tpu.memory_space<vmem>>, vector<1x384xf32>
    %8 = vector.shape_cast %7 : vector<1x384xf32> to vector<1x384xf32>
    %9 = vector.broadcast %8 : vector<1x384xf32> to vector<8x384xf32>
    %c0_8 = arith.constant 0 : index
    %c0_9 = arith.constant 0 : index
    %c0_10 = arith.constant 0 : index
    %10 = vector.load %arg2[%c0_8, %c0_9, %c0_10] : memref<1x8x128xf32, #tpu.memory_space<vmem>>, vector<1x8x128xf32>
    %11 = vector.shape_cast %10 : vector<1x8x128xf32> to vector<8x128xf32>
    %c0_i32 = arith.constant 0 : i32
    %cst = arith.constant dense<0.000000e+00> : vector<8x1152xf32>
    %12 = tpu.matmul %11, %3, %cst {dimension_numbers = #tpu.dot_dimension_numbers<[1], [0], [0], [1], [0, 0, 1, 1], [], []>} : vector<8x128xf32>, vector<128x1152xf32>, vector<8x1152xf32> -> vector<8x1152xf32>
    %13 = arith.addf %12, %6 : vector<8x1152xf32>
    %14 = vector.extract_strided_slice %13 {offsets = [0, 0], sizes = [8, 384], strides = [1, 1]} : vector<8x1152xf32> to vector<8x384xf32>
    %15 = vector.shape_cast %14 : vector<8x384xf32> to vector<1x8x384xf32>
    %16 = vector.extract_strided_slice %13 {offsets = [0, 384], sizes = [8, 384], strides = [1, 1]} : vector<8x1152xf32> to vector<8x384xf32>
    %17 = vector.shape_cast %16 : vector<8x384xf32> to vector<1x8x384xf32>
    %18 = vector.extract_strided_slice %13 {offsets = [0, 768], sizes = [8, 384], strides = [1, 1]} : vector<8x1152xf32> to vector<8x384xf32>
    "tpu.trace_start"() <{level = 10 : i32, message = "bij,bjk->bik"}> : () -> ()
    %cst_11 = arith.constant dense<0.000000e+00> : vector<1x8x384xf32>
    %19 = tpu.matmul %1, %15, %cst_11 {dimension_numbers = #tpu.dot_dimension_numbers<[2], [1], [1], [2], [0, 0, 0, 1, 1, 2], [0], [0]>} : vector<1x8x8xf32>, vector<1x8x384xf32>, vector<1x8x384xf32> -> vector<1x8x384xf32>
    %cst_12 = arith.constant dense<0.000000e+00> : vector<1x8x384xf32>
    %20 = tpu.matmul %2, %17, %cst_12 {dimension_numbers = #tpu.dot_dimension_numbers<[2], [1], [1], [2], [0, 0, 0, 1, 1, 2], [0], [0]>} : vector<1x8x8xf32>, vector<1x8x384xf32>, vector<1x8x384xf32> -> vector<1x8x384xf32>
    "tpu.trace_stop"() : () -> ()
    %21 = arith.addf %19, %20 : vector<1x8x384xf32>
    %22 = vector.shape_cast %21 : vector<1x8x384xf32> to vector<8x384xf32>
    %23 = arith.addf %22, %9 : vector<8x384xf32>
    %24 = vector.extract_strided_slice %23 {offsets = [0, 0], sizes = [8, 128], strides = [1, 1]} : vector<8x384xf32> to vector<8x128xf32>
    %25 = vector.extract_strided_slice %23 {offsets = [0, 128], sizes = [8, 128], strides = [1, 1]} : vector<8x384xf32> to vector<8x128xf32>
    %26 = vector.extract_strided_slice %23 {offsets = [0, 256], sizes = [8, 128], strides = [1, 1]} : vector<8x384xf32> to vector<8x128xf32>
    %27 = vector.extract_strided_slice %18 {offsets = [0, 0], sizes = [8, 128], strides = [1, 1]} : vector<8x384xf32> to vector<8x128xf32>
    %28 = vector.extract_strided_slice %18 {offsets = [0, 128], sizes = [8, 128], strides = [1, 1]} : vector<8x384xf32> to vector<8x128xf32>
    %29 = vector.extract_strided_slice %18 {offsets = [0, 256], sizes = [8, 128], strides = [1, 1]} : vector<8x384xf32> to vector<8x128xf32>
    %30 = arith.addf %24, %27 : vector<8x128xf32>
    %31 = arith.negf %30 : vector<8x128xf32>
    %32 = math.exp %31 : vector<8x128xf32>
    %cst_13 = arith.constant 1.000000e+00 : f32
    %33 = vector.broadcast %cst_13 : f32 to vector<8x128xf32>
    %34 = arith.addf %33, %32 : vector<8x128xf32>
    %35 = arith.divf %33, %34 : vector<8x128xf32>
    %36 = arith.addf %25, %28 : vector<8x128xf32>
    %37 = arith.negf %36 : vector<8x128xf32>
    %38 = math.exp %37 : vector<8x128xf32>
    %cst_14 = arith.constant 1.000000e+00 : f32
    %39 = vector.broadcast %cst_14 : f32 to vector<8x128xf32>
    %40 = arith.addf %39, %38 : vector<8x128xf32>
    %41 = arith.divf %39, %40 : vector<8x128xf32>
    %42 = arith.mulf %35, %29 : vector<8x128xf32>
    %43 = arith.addf %26, %42 : vector<8x128xf32>
    %44 = math.tanh %43 : vector<8x128xf32>
    %45 = arith.subf %11, %44 : vector<8x128xf32>
    %46 = arith.mulf %41, %45 : vector<8x128xf32>
    %47 = arith.subf %11, %46 : vector<8x128xf32>
    %c1_i32 = arith.constant 1 : i32
    %cst_15 = arith.constant dense<0.000000e+00> : vector<8x1152xf32>
    %48 = tpu.matmul %47, %3, %cst_15 {dimension_numbers = #tpu.dot_dimension_numbers<[1], [0], [0], [1], [0, 0, 1, 1], [], []>} : vector<8x128xf32>, vector<128x1152xf32>, vector<8x1152xf32> -> vector<8x1152xf32>
    %49 = arith.addf %48, %6 : vector<8x1152xf32>
    %50 = vector.extract_strided_slice %49 {offsets = [0, 0], sizes = [8, 384], strides = [1, 1]} : vector<8x1152xf32> to vector<8x384xf32>
    %51 = vector.shape_cast %50 : vector<8x384xf32> to vector<1x8x384xf32>
    %52 = vector.extract_strided_slice %49 {offsets = [0, 384], sizes = [8, 384], strides = [1, 1]} : vector<8x1152xf32> to vector<8x384xf32>
    %53 = vector.shape_cast %52 : vector<8x384xf32> to vector<1x8x384xf32>
    %54 = vector.extract_strided_slice %49 {offsets = [0, 768], sizes = [8, 384], strides = [1, 1]} : vector<8x1152xf32> to vector<8x384xf32>
    "tpu.trace_start"() <{level = 10 : i32, message = "bij,bjk->bik"}> : () -> ()
    %cst_16 = arith.constant dense<0.000000e+00> : vector<1x8x384xf32>
    %55 = tpu.matmul %1, %51, %cst_16 {dimension_numbers = #tpu.dot_dimension_numbers<[2], [1], [1], [2], [0, 0, 0, 1, 1, 2], [0], [0]>} : vector<1x8x8xf32>, vector<1x8x384xf32>, vector<1x8x384xf32> -> vector<1x8x384xf32>
    %cst_17 = arith.constant dense<0.000000e+00> : vector<1x8x384xf32>
    %56 = tpu.matmul %2, %53, %cst_17 {dimension_numbers = #tpu.dot_dimension_numbers<[2], [1], [1], [2], [0, 0, 0, 1, 1, 2], [0], [0]>} : vector<1x8x8xf32>, vector<1x8x384xf32>, vector<1x8x384xf32> -> vector<1x8x384xf32>
    "tpu.trace_stop"() : () -> ()
    %57 = arith.addf %55, %56 : vector<1x8x384xf32>
    %58 = vector.shape_cast %57 : vector<1x8x384xf32> to vector<8x384xf32>
    %59 = arith.addf %58, %9 : vector<8x384xf32>
    %60 = vector.extract_strided_slice %59 {offsets = [0, 0], sizes = [8, 128], strides = [1, 1]} : vector<8x384xf32> to vector<8x128xf32>
    %61 = vector.extract_strided_slice %59 {offsets = [0, 128], sizes = [8, 128], strides = [1, 1]} : vector<8x384xf32> to vector<8x128xf32>
    %62 = vector.extract_strided_slice %59 {offsets = [0, 256], sizes = [8, 128], strides = [1, 1]} : vector<8x384xf32> to vector<8x128xf32>
    %63 = vector.extract_strided_slice %54 {offsets = [0, 0], sizes = [8, 128], strides = [1, 1]} : vector<8x384xf32> to vector<8x128xf32>
    %64 = vector.extract_strided_slice %54 {offsets = [0, 128], sizes = [8, 128], strides = [1, 1]} : vector<8x384xf32> to vector<8x128xf32>
    %65 = vector.extract_strided_slice %54 {offsets = [0, 256], sizes = [8, 128], strides = [1, 1]} : vector<8x384xf32> to vector<8x128xf32>
    %66 = arith.addf %60, %63 : vector<8x128xf32>
    %67 = arith.negf %66 : vector<8x128xf32>
    %68 = math.exp %67 : vector<8x128xf32>
    %cst_18 = arith.constant 1.000000e+00 : f32
    %69 = vector.broadcast %cst_18 : f32 to vector<8x128xf32>
    %70 = arith.addf %69, %68 : vector<8x128xf32>
    %71 = arith.divf %69, %70 : vector<8x128xf32>
    %72 = arith.addf %61, %64 : vector<8x128xf32>
    %73 = arith.negf %72 : vector<8x128xf32>
    %74 = math.exp %73 : vector<8x128xf32>
    %cst_19 = arith.constant 1.000000e+00 : f32
    %75 = vector.broadcast %cst_19 : f32 to vector<8x128xf32>
    %76 = arith.addf %75, %74 : vector<8x128xf32>
    %77 = arith.divf %75, %76 : vector<8x128xf32>
    %78 = arith.mulf %71, %65 : vector<8x128xf32>
    %79 = arith.addf %62, %78 : vector<8x128xf32>
    %80 = math.tanh %79 : vector<8x128xf32>
    %81 = arith.subf %47, %80 : vector<8x128xf32>
    %82 = arith.mulf %77, %81 : vector<8x128xf32>
    %83 = arith.subf %47, %82 : vector<8x128xf32>
    %84 = vector.shape_cast %83 : vector<8x128xf32> to vector<1x8x128xf32>
    %c0_20 = arith.constant 0 : index
    %c0_21 = arith.constant 0 : index
    %c0_22 = arith.constant 0 : index
    %85 = vector.load %arg6[%c0_20, %c0_21, %c0_22] : memref<1x8x128xf32, #tpu.memory_space<vmem>>, vector<1x8x128xf32>
    tpu.vector_store %arg6[%c0_20, %c0_21, %c0_22], %84 {strides = array<i32>} : memref<1x8x128xf32, #tpu.memory_space<vmem>>, vector<1x8x128xf32>,
    return
  }
  func.func @transform_0(%arg0: i32) -> (i32, i32, i32) {
    %c0_i32 = arith.constant 0 : i32
    %c0_i32_0 = arith.constant 0 : i32
    %c0_i32_1 = arith.constant 0 : i32
    return %arg0, %c0_i32, %c0_i32_0 : i32, i32, i32
  }
  func.func @transform_1(%arg0: i32) -> (i32, i32, i32) {
    %c0_i32 = arith.constant 0 : i32
    %c0_i32_0 = arith.constant 0 : i32
    %c0_i32_1 = arith.constant 0 : i32
    return %arg0, %c0_i32, %c0_i32_0 : i32, i32, i32
  }
  func.func @transform_2(%arg0: i32) -> (i32, i32) {
    %c0_i32 = arith.constant 0 : i32
    %c0_i32_0 = arith.constant 0 : i32
    %c0_i32_1 = arith.constant 0 : i32
    return %c0_i32, %c0_i32_0 : i32, i32
  }
  func.func @transform_3(%arg0: i32) -> (i32, i32) {
    %c0_i32 = arith.constant 0 : i32
    %c0_i32_0 = arith.constant 0 : i32
    %c0_i32_1 = arith.constant 0 : i32
    return %c0_i32, %c0_i32_0 : i32, i32
  }
  func.func @transform_4(%arg0: i32) -> (i32, i32) {
    %c0_i32 = arith.constant 0 : i32
    %c0_i32_0 = arith.constant 0 : i32
    %c0_i32_1 = arith.constant 0 : i32
    return %c0_i32, %c0_i32_0 : i32, i32
  }
  func.func @transform_5(%arg0: i32) -> (i32, i32, i32) {
    %c0_i32 = arith.constant 0 : i32
    %c0_i32_0 = arith.constant 0 : i32
    %c0_i32_1 = arith.constant 0 : i32
    return %arg0, %c0_i32, %c0_i32_0 : i32, i32, i32
  }
}

</mosaic_0001>

<llo_original>
// kernel: gnn_forward.1
$region0: #{gnn_forward.1}
  #allocation0 [shape = 'u32[]', space=smem, size = 0x4, offset = 0x4, fixed_abs, tag = 'smem constant byte address 0x4 - core index']
  #allocation1 [shape = 'u32[72,128]{1,0:T(1,128)}', space=vmem, size = 0x9000, scoped, tag = 'internal scratch']
  %s0 = inlined_call_operand.vmem [shape: f32[2,8,16], index: 0, kind: input, shape index: {}]
  %s1 = inlined_call_operand.vmem [shape: f32[2,8,128], index: 1, kind: input, shape index: {}]
  %s2 = inlined_call_operand.vmem [shape: f32[128,1152], index: 2, kind: input, shape index: {}]
  %s3 = inlined_call_operand.vmem [shape: f32[1,1152], index: 3, kind: input, shape index: {}]
  %s4 = inlined_call_operand.vmem [shape: f32[1,384], index: 4, kind: input, shape index: {}]
  %s5 = inlined_call_operand.hbm [shape: f32[2,8,128], index: 5, kind: output, shape index: {}]
  %s6 = sld [smem:[#allocation0]]
  $region53: #{gnn_forward.1} parent=0
    _
  %s8 = ssub.s32 1, %s6
  %s9 = scalar_select 0, %s8, %s6
  $region1: #{gnn_forward.1} parent=0
    #allocation2 [shape = 'u8[8192]{0}', space=vmem, size = 0x2000, scoped, tag = 'output window, operand 0']
    #allocation3 [shape = 's32[2]{0}', space=sflag, size = 0x8, scoped, tag = 'scoped memory for gnn_forward.1']
    %10 = vsyncpa [#allocation3], 0
    %s11 = scalar_lea.sflag [#allocation3], 1
    %12 = vsyncpa %s11, 0
    loop: start=0, step=1, limit=4
    $region2: #{gnn_forward.1} parent=1 // loop_pre_header
      _
    $region3: #{gnn_forward.1} parent=1 // loop_header
      %s14 = sphi 0, %s18
      %p15 = scmp.ge.s32.totalorder %s14, 4
      %s24 = sphi 0, %s26
      %s27 = sphi 0, %s24
      %s28 = sphi 0, %s27
      %s44 = sphi 0, %s28
      %s50 = sphi 0, %s52
      %s53 = sphi 0, %s50
      %s54 = sphi 0, %s53
      %s70 = sphi 0, %s54
      %s74 = sphi 0, %s74
      %s76 = sphi 0, %s74
      %s77 = sphi 0, %s76
      %s91 = sphi 0, %s77
      %s95 = sphi 0, %s95
      %s97 = sphi 0, %s95
      %s98 = sphi 0, %s97
      %s112 = sphi 0, %s98
      %s116 = sphi 0, %s116
      %s118 = sphi 0, %s116
      %s119 = sphi 0, %s118
      %s133 = sphi 0, %s119
      %s139 = sphi 0, %s141
      %s142 = sphi 0, %s139
      %s143 = sphi 0, %s142
      %s159 = sphi 0, %s143
    $region4: #{gnn_forward.1} parent=1 // loop_header_branch
      %17 = sbr.rel (%p15) target = $region8
    $region5: #{gnn_forward.1} parent=1 // loop_body
      %s19 = ssub.s32 %s14, 1
      %s20 = ssub.s32 %s14, 2
      %s21 = sadd.s32 %s14, 1
      %s22 = ssub.s32 %s14, %s21
      %p23 = scmp.eq.s32.totalorder %s22, 0
      %s25 = sadd.s32 %s24, 1
      %s26 = scalar_select %p23, %s24, %s25
      %p29 = pneg %p23
      %p30 = scmp.eq.s32.totalorder %s14, 1
      %p31 = por %p29, %p30
      %p32 = scmp.ne.s32.totalorder %s24, %s27
      %p33 = scmp.eq.s32.totalorder %s14, 0
      %p34 = por %p32, %p33
      %p35 = scmp.ne.s32.totalorder %s24, %s27
      %p36 = scmp.eq.s32.totalorder %s19, 1
      %p37 = por %p35, %p36
      %p38 = scmp.ne.s32.totalorder %s27, %s28
      %p39 = scmp.eq.s32.totalorder %s19, 0
      %p40 = por %p38, %p39
      %p41 = scmp.ne.s32.totalorder %s27, %s28
      %p42 = scmp.eq.s32.totalorder %s20, 1
      %p43 = por %p41, %p42
      %p45 = scmp.ne.s32.totalorder %s28, %s44
      %p46 = scmp.eq.s32.totalorder %s20, 0
      %p47 = por %p45, %p46
      %s48 = ssub.s32 %s14, %s21
      %p49 = scmp.eq.s32.totalorder %s48, 0
      %s51 = sadd.s32 %s50, 1
      %s52 = scalar_select %p49, %s50, %s51
      %p55 = pneg %p49
      %p56 = scmp.eq.s32.totalorder %s14, 1
      %p57 = por %p55, %p56
      %p58 = scmp.ne.s32.totalorder %s50, %s53
      %p59 = scmp.eq.s32.totalorder %s14, 0
      %p60 = por %p58, %p59
      %p61 = scmp.ne.s32.totalorder %s50, %s53
      %p62 = scmp.eq.s32.totalorder %s19, 1
      %p63 = por %p61, %p62
      %p64 = scmp.ne.s32.totalorder %s53, %s54
      %p65 = scmp.eq.s32.totalorder %s19, 0
      %p66 = por %p64, %p65
      %p67 = scmp.ne.s32.totalorder %s53, %s54
      %p68 = scmp.eq.s32.totalorder %s20, 1
      %p69 = por %p67, %p68
      %p71 = scmp.ne.s32.totalorder %s54, %s70
      %p72 = scmp.eq.s32.totalorder %s20, 0
      %p73 = por %p71, %p72
      %s75 = sadd.s32 %s74, 1
      %p78 = scmp.eq.s32.totalorder %s14, 1
      %p79 = scmp.ne.s32.totalorder %s74, %s76
      %p80 = scmp.eq.s32.totalorder %s14, 0
      %p81 = por %p79, %p80
      %p82 = scmp.ne.s32.totalorder %s74, %s76
      %p83 = scmp.eq.s32.totalorder %s19, 1
      %p84 = por %p82, %p83
      %p85 = scmp.ne.s32.totalorder %s76, %s77
      %p86 = scmp.eq.s32.totalorder %s19, 0
      %p87 = por %p85, %p86
      %p88 = scmp.ne.s32.totalorder %s76, %s77
      %p89 = scmp.eq.s32.totalorder %s20, 1
      %p90 = por %p88, %p89
      %p92 = scmp.ne.s32.totalorder %s77, %s91
      %p93 = scmp.eq.s32.totalorder %s20, 0
      %p94 = por %p92, %p93
      %s96 = sadd.s32 %s95, 1
      %p99 = scmp.eq.s32.totalorder %s14, 1
      %p100 = scmp.ne.s32.totalorder %s95, %s97
      %p101 = scmp.eq.s32.totalorder %s14, 0
      %p102 = por %p100, %p101
      %p103 = scmp.ne.s32.totalorder %s95, %s97
      %p104 = scmp.eq.s32.totalorder %s19, 1
      %p105 = por %p103, %p104
      %p106 = scmp.ne.s32.totalorder %s97, %s98
      %p107 = scmp.eq.s32.totalorder %s19, 0
      %p108 = por %p106, %p107
      %p109 = scmp.ne.s32.totalorder %s97, %s98
      %p110 = scmp.eq.s32.totalorder %s20, 1
      %p111 = por %p109, %p110
      %p113 = scmp.ne.s32.totalorder %s98, %s112
      %p114 = scmp.eq.s32.totalorder %s20, 0
      %p115 = por %p113, %p114
      %s117 = sadd.s32 %s116, 1
      %p120 = scmp.eq.s32.totalorder %s14, 1
      %p121 = scmp.ne.s32.totalorder %s116, %s118
      %p122 = scmp.eq.s32.totalorder %s14, 0
      %p123 = por %p121, %p122
      %p124 = scmp.ne.s32.totalorder %s116, %s118
      %p125 = scmp.eq.s32.totalorder %s19, 1
      %p126 = por %p124, %p125
      %p127 = scmp.ne.s32.totalorder %s118, %s119
      %p128 = scmp.eq.s32.totalorder %s19, 0
      %p129 = por %p127, %p128
      %p130 = scmp.ne.s32.totalorder %s118, %s119
      %p131 = scmp.eq.s32.totalorder %s20, 1
      %p132 = por %p130, %p131
      %p134 = scmp.ne.s32.totalorder %s119, %s133
      %p135 = scmp.eq.s32.totalorder %s20, 0
      %p136 = por %p134, %p135
      %s137 = ssub.s32 %s14, %s21
      %p138 = scmp.eq.s32.totalorder %s137, 0
      %s140 = sadd.s32 %s139, 1
      %s141 = scalar_select %p138, %s139, %s140
      %p144 = pneg %p138
      %p145 = scmp.eq.s32.totalorder %s14, 1
      %p146 = por %p144, %p145
      %p147 = scmp.ne.s32.totalorder %s139, %s142
      %p148 = scmp.eq.s32.totalorder %s14, 0
      %p149 = por %p147, %p148
      %p150 = scmp.ne.s32.totalorder %s139, %s142
      %p151 = scmp.eq.s32.totalorder %s19, 1
      %p152 = por %p150, %p151
      %p153 = scmp.ne.s32.totalorder %s142, %s143
      %p154 = scmp.eq.s32.totalorder %s19, 0
      %p155 = por %p153, %p154
      %p156 = scmp.ne.s32.totalorder %s142, %s143
      %p157 = scmp.eq.s32.totalorder %s20, 1
      %p158 = por %p156, %p157
      %p160 = scmp.ne.s32.totalorder %s143, %s159
      %p161 = scmp.eq.s32.totalorder %s20, 0
      %p162 = por %p160, %p161
      %p163 = scmp.le.s32.totalorder 1, %s14
      %p164 = scmp.lt.s32.totalorder %s14, 3
      %p165 = pnand %p163, %p164
      %p166 = pneg %p165
      // Predicated region
      $region9: #{gnn_forward.1} parent=5 // pred_check
        _
      $region10: #{gnn_forward.1} parent=5 // pred_check_branch
        %168 = sbr.rel (%p165) target = $region12
      $region11: #{gnn_forward.1} parent=5 // pred_region
        %s169 = ssub.s32 %s14, 1
        // Predicated region
        $region13: #{gnn_forward.1} parent=11 // pred_check
          %p170 = pneg %p87
        $region14: #{gnn_forward.1} parent=11 // pred_check_branch
          %172 = sbr.rel (%p170) target = $region16
        $region15: #{gnn_forward.1} parent=11 // pred_region
          _
        $region16: #{gnn_forward.1} parent=11 // pred_fallthru
          _
        // Predicated region
        $region17: #{gnn_forward.1} parent=11 // pred_check
          %p173 = pneg %p108
        $region18: #{gnn_forward.1} parent=11 // pred_check_branch
          %175 = sbr.rel (%p173) target = $region20
        $region19: #{gnn_forward.1} parent=11 // pred_region
          _
        $region20: #{gnn_forward.1} parent=11 // pred_fallthru
          _
        // Predicated region
        $region21: #{gnn_forward.1} parent=11 // pred_check
          %p176 = pneg %p129
        $region22: #{gnn_forward.1} parent=11 // pred_check_branch
          %178 = sbr.rel (%p176) target = $region24
        $region23: #{gnn_forward.1} parent=11 // pred_region
          _
        $region24: #{gnn_forward.1} parent=11 // pred_fallthru
          _
      $region12: #{gnn_forward.1} parent=5 // pred_fallthru
        _
      %p179 = scmp.lt.s32.totalorder %s14, 2
      // Predicated region
      $region25: #{gnn_forward.1} parent=5 // pred_check
        %p180 = pneg %p179
      $region26: #{gnn_forward.1} parent=5 // pred_check_branch
        %182 = sbr.rel (%p180) target = $region28
      $region27: #{gnn_forward.1} parent=5 // pred_region
        // Predicated region
        $region29: #{gnn_forward.1} parent=27 // pred_check
          %p183 = pneg %p34
        $region30: #{gnn_forward.1} parent=27 // pred_check_branch
          %185 = sbr.rel (%p183) target = $region32
        $region31: #{gnn_forward.1} parent=27 // pred_region
          %p186 = scmp.lt.s32.totalorder %s14, 1
          %s187 = scalar_select %p186, %s14, 1
          %s188 = smul.addr %s187, 8
          %s189 = scalar_lea.vmem %s0, %s188
        $region32: #{gnn_forward.1} parent=27 // pred_fallthru
          _
        // Predicated region
        $region33: #{gnn_forward.1} parent=27 // pred_check
          %p190 = pneg %p60
        $region34: #{gnn_forward.1} parent=27 // pred_check_branch
          %192 = sbr.rel (%p190) target = $region36
        $region35: #{gnn_forward.1} parent=27 // pred_region
          %p193 = scmp.lt.s32.totalorder %s14, 1
          %s194 = scalar_select %p193, %s14, 1
          %s195 = smul.addr %s194, 8
          %s196 = scalar_lea.vmem %s1, %s195
        $region36: #{gnn_forward.1} parent=27 // pred_fallthru
          _
      $region28: #{gnn_forward.1} parent=5 // pred_fallthru
        _
      %p197 = scmp.le.s32.totalorder 1, %s14
      %p198 = scmp.lt.s32.totalorder %s14, 3
      %p199 = pnand %p197, %p198
      %p200 = pneg %p199
      // Predicated region
      $region37: #{gnn_forward.1} parent=5 // pred_check
        _
      $region38: #{gnn_forward.1} parent=5 // pred_check_branch
        %202 = sbr.rel (%p199) target = $region40
      $region39: #{gnn_forward.1} parent=5 // pred_region
        %s203 = ssub.s32 %s14, 1
        %p204 = scmp.lt.s32.totalorder %s19, 1
        %s205 = scalar_select %p204, %s19, 1
        %s206 = smul.addr %s205, 8
        %s207 = scalar_lea.vmem %s0, %s206
        %p208 = pneg %p40
        %p209 = pneg %p37
        %p210 = scmp.lt.s32.totalorder %s19, 1
        %s211 = scalar_select %p210, %s19, 1
        %s212 = smul.addr %s211, 8
        %s213 = scalar_lea.vmem %s1, %s212
        %p214 = pneg %p66
        %p215 = pneg %p63
        %p216 = pneg %p87
        %p217 = pneg %p84
        %p218 = pneg %p108
        %p219 = pneg %p105
        %p220 = pneg %p129
        %p221 = pneg %p126
        %p222 = pneg %p155
        %p223 = pneg %p152
        %s224 = sand.u32 %s142, 1
        %s225 = scalar_lea.sflag [#allocation3], %s224
        %s226 = sand.u32 %s142, 1
        %s227 = smul.addr %s226, 8
        %s228 = scalar_lea.vmem [#allocation2], %s227
        %p229 = scmp.lt.s32.totalorder %s19, 1
        %s230 = scalar_select %p229, %s19, 1
        %s231 = smul.addr %s230, 8
        %s232 = scalar_lea.vmem %s0, %s231
        %p233 = scmp.lt.s32.totalorder %s19, 1
        %s234 = scalar_select %p233, %s19, 1
        %s235 = smul.addr %s234, 8
        %s236 = scalar_lea.vmem %s1, %s235
        %v237 = vld [vmem:[%s232] sm:$0xff]
        %v238 = vld [vmem:[%s2] sm:$0xff]
        %v239 = vld [vmem:[%s2 + $0x8] sm:$0xff]
        %v240 = vld [vmem:[%s2 + $0x10] sm:$0xff]
        %v241 = vld [vmem:[%s2 + $0x18] sm:$0xff]
        %v242 = vld [vmem:[%s2 + $0x20] sm:$0xff]
        %v243 = vld [vmem:[%s2 + $0x28] sm:$0xff]
        %v244 = vld [vmem:[%s2 + $0x30] sm:$0xff]
        %v245 = vld [vmem:[%s2 + $0x38] sm:$0xff]
        %v246 = vld [vmem:[%s2 + $0x40] sm:$0xff]
        %v247 = vld [vmem:[%s2 + $0x48] sm:$0xff]
        %v248 = vld [vmem:[%s2 + $0x50] sm:$0xff]
        %v249 = vld [vmem:[%s2 + $0x58] sm:$0xff]
        %v250 = vld [vmem:[%s2 + $0x60] sm:$0xff]
        %v251 = vld [vmem:[%s2 + $0x68] sm:$0xff]
        %v252 = vld [vmem:[%s2 + $0x70] sm:$0xff]
        %v253 = vld [vmem:[%s2 + $0x78] sm:$0xff]
        %v254 = vld [vmem:[%s2 + $0x80] sm:$0xff]
        %v255 = vld [vmem:[%s2 + $0x88] sm:$0xff]
        %v256 = vld [vmem:[%s2 + $0x90] sm:$0xff]
        %v257 = vld [vmem:[%s2 + $0x98] sm:$0xff]
        %v258 = vld [vmem:[%s2 + $0xa0] sm:$0xff]
        %v259 = vld [vmem:[%s2 + $0xa8] sm:$0xff]
        %v260 = vld [vmem:[%s2 + $0xb0] sm:$0xff]
        %v261 = vld [vmem:[%s2 + $0xb8] sm:$0xff]
        %v262 = vld [vmem:[%s2 + $0xc0] sm:$0xff]
        %v263 = vld [vmem:[%s2 + $0xc8] sm:$0xff]
        %v264 = vld [vmem:[%s2 + $0xd0] sm:$0xff]
        %v265 = vld [vmem:[%s2 + $0xd8] sm:$0xff]
        %v266 = vld [vmem:[%s2 + $0xe0] sm:$0xff]
        %v267 = vld [vmem:[%s2 + $0xe8] sm:$0xff]
        %v268 = vld [vmem:[%s2 + $0xf0] sm:$0xff]
        %v269 = vld [vmem:[%s2 + $0xf8] sm:$0xff]
        %v270 = vld [vmem:[%s2 + $0x100] sm:$0xff]
        %v271 = vld [vmem:[%s2 + $0x108] sm:$0xff]
        %v272 = vld [vmem:[%s2 + $0x110] sm:$0xff]
        %v273 = vld [vmem:[%s2 + $0x118] sm:$0xff]
        %v274 = vld [vmem:[%s2 + $0x120] sm:$0xff]
        %v275 = vld [vmem:[%s2 + $0x128] sm:$0xff]
        %v276 = vld [vmem:[%s2 + $0x130] sm:$0xff]
        %v277 = vld [vmem:[%s2 + $0x138] sm:$0xff]
        %v278 = vld [vmem:[%s2 + $0x140] sm:$0xff]
        %v279 = vld [vmem:[%s2 + $0x148] sm:$0xff]
        %v280 = vld [vmem:[%s2 + $0x150] sm:$0xff]
        %v281 = vld [vmem:[%s2 + $0x158] sm:$0xff]
        %v282 = vld [vmem:[%s2 + $0x160] sm:$0xff]
        %v283 = vld [vmem:[%s2 + $0x168] sm:$0xff]
        %v284 = vld [vmem:[%s2 + $0x170] sm:$0xff]
        %v285 = vld [vmem:[%s2 + $0x178] sm:$0xff]
        %v286 = vld [vmem:[%s2 + $0x180] sm:$0xff]
        %v287 = vld [vmem:[%s2 + $0x188] sm:$0xff]
        %v288 = vld [vmem:[%s2 + $0x190] sm:$0xff]
        %v289 = vld [vmem:[%s2 + $0x198] sm:$0xff]
        %v290 = vld [vmem:[%s2 + $0x1a0] sm:$0xff]
        %v291 = vld [vmem:[%s2 + $0x1a8] sm:$0xff]
        %v292 = vld [vmem:[%s2 + $0x1b0] sm:$0xff]
        %v293 = vld [vmem:[%s2 + $0x1b8] sm:$0xff]
        %v294 = vld [vmem:[%s2 + $0x1c0] sm:$0xff]
        %v295 = vld [vmem:[%s2 + $0x1c8] sm:$0xff]
        %v296 = vld [vmem:[%s2 + $0x1d0] sm:$0xff]
        %v297 = vld [vmem:[%s2 + $0x1d8] sm:$0xff]
        %v298 = vld [vmem:[%s2 + $0x1e0] sm:$0xff]
        %v299 = vld [vmem:[%s2 + $0x1e8] sm:$0xff]
        %v300 = vld [vmem:[%s2 + $0x1f0] sm:$0xff]
        %v301 = vld [vmem:[%s2 + $0x1f8] sm:$0xff]
        %v302 = vld [vmem:[%s2 + $0x200] sm:$0xff]
        %v303 = vld [vmem:[%s2 + $0x208] sm:$0xff]
        %v304 = vld [vmem:[%s2 + $0x210] sm:$0xff]
        %v305 = vld [vmem:[%s2 + $0x218] sm:$0xff]
        %v306 = vld [vmem:[%s2 + $0x220] sm:$0xff]
        %v307 = vld [vmem:[%s2 + $0x228] sm:$0xff]
        %v308 = vld [vmem:[%s2 + $0x230] sm:$0xff]
        %v309 = vld [vmem:[%s2 + $0x238] sm:$0xff]
        %v310 = vld [vmem:[%s2 + $0x240] sm:$0xff]
        %v311 = vld [vmem:[%s2 + $0x248] sm:$0xff]
        %v312 = vld [vmem:[%s2 + $0x250] sm:$0xff]
        %v313 = vld [vmem:[%s2 + $0x258] sm:$0xff]
        %v314 = vld [vmem:[%s2 + $0x260] sm:$0xff]
        %v315 = vld [vmem:[%s2 + $0x268] sm:$0xff]
        %v316 = vld [vmem:[%s2 + $0x270] sm:$0xff]
        %v317 = vld [vmem:[%s2 + $0x278] sm:$0xff]
        %v318 = vld [vmem:[%s2 + $0x280] sm:$0xff]
        %v319 = vld [vmem:[%s2 + $0x288] sm:$0xff]
        %v320 = vld [vmem:[%s2 + $0x290] sm:$0xff]
        %v321 = vld [vmem:[%s2 + $0x298] sm:$0xff]
        %v322 = vld [vmem:[%s2 + $0x2a0] sm:$0xff]
        %v323 = vld [vmem:[%s2 + $0x2a8] sm:$0xff]
        %v324 = vld [vmem:[%s2 + $0x2b0] sm:$0xff]
        %v325 = vld [vmem:[%s2 + $0x2b8] sm:$0xff]
        %v326 = vld [vmem:[%s2 + $0x2c0] sm:$0xff]
        %v327 = vld [vmem:[%s2 + $0x2c8] sm:$0xff]
        %v328 = vld [vmem:[%s2 + $0x2d0] sm:$0xff]
        %v329 = vld [vmem:[%s2 + $0x2d8] sm:$0xff]
        %v330 = vld [vmem:[%s2 + $0x2e0] sm:$0xff]
        %v331 = vld [vmem:[%s2 + $0x2e8] sm:$0xff]
        %v332 = vld [vmem:[%s2 + $0x2f0] sm:$0xff]
        %v333 = vld [vmem:[%s2 + $0x2f8] sm:$0xff]
        %v334 = vld [vmem:[%s2 + $0x300] sm:$0xff]
        %v335 = vld [vmem:[%s2 + $0x308] sm:$0xff]
        %v336 = vld [vmem:[%s2 + $0x310] sm:$0xff]
        %v337 = vld [vmem:[%s2 + $0x318] sm:$0xff]
        %v338 = vld [vmem:[%s2 + $0x320] sm:$0xff]
        %v339 = vld [vmem:[%s2 + $0x328] sm:$0xff]
        %v340 = vld [vmem:[%s2 + $0x330] sm:$0xff]
        %v341 = vld [vmem:[%s2 + $0x338] sm:$0xff]
        %v342 = vld [vmem:[%s2 + $0x340] sm:$0xff]
        %v343 = vld [vmem:[%s2 + $0x348] sm:$0xff]
        %v344 = vld [vmem:[%s2 + $0x350] sm:$0xff]
        %v345 = vld [vmem:[%s2 + $0x358] sm:$0xff]
        %v346 = vld [vmem:[%s2 + $0x360] sm:$0xff]
        %v347 = vld [vmem:[%s2 + $0x368] sm:$0xff]
        %v348 = vld [vmem:[%s2 + $0x370] sm:$0xff]
        %v349 = vld [vmem:[%s2 + $0x378] sm:$0xff]
        %v350 = vld [vmem:[%s2 + $0x380] sm:$0xff]
        %v351 = vld [vmem:[%s2 + $0x388] sm:$0xff]
        %v352 = vld [vmem:[%s2 + $0x390] sm:$0xff]
        %v353 = vld [vmem:[%s2 + $0x398] sm:$0xff]
        %v354 = vld [vmem:[%s2 + $0x3a0] sm:$0xff]
        %v355 = vld [vmem:[%s2 + $0x3a8] sm:$0xff]
        %v356 = vld [vmem:[%s2 + $0x3b0] sm:$0xff]
        %v357 = vld [vmem:[%s2 + $0x3b8] sm:$0xff]
        %v358 = vld [vmem:[%s2 + $0x3c0] sm:$0xff]
        %v359 = vld [vmem:[%s2 + $0x3c8] sm:$0xff]
        %v360 = vld [vmem:[%s2 + $0x3d0] sm:$0xff]
        %v361 = vld [vmem:[%s2 + $0x3d8] sm:$0xff]
        %v362 = vld [vmem:[%s2 + $0x3e0] sm:$0xff]
        %v363 = vld [vmem:[%s2 + $0x3e8] sm:$0xff]
        %v364 = vld [vmem:[%s2 + $0x3f0] sm:$0xff]
        %v365 = vld [vmem:[%s2 + $0x3f8] sm:$0xff]
        %v366 = vld [vmem:[%s2 + $0x400] sm:$0xff]
        %v367 = vld [vmem:[%s2 + $0x408] sm:$0xff]
        %v368 = vld [vmem:[%s2 + $0x410] sm:$0xff]
        %v369 = vld [vmem:[%s2 + $0x418] sm:$0xff]
        %v370 = vld [vmem:[%s2 + $0x420] sm:$0xff]
        %v371 = vld [vmem:[%s2 + $0x428] sm:$0xff]
        %v372 = vld [vmem:[%s2 + $0x430] sm:$0xff]
        %v373 = vld [vmem:[%s2 + $0x438] sm:$0xff]
        %v374 = vld [vmem:[%s2 + $0x440] sm:$0xff]
        %v375 = vld [vmem:[%s2 + $0x448] sm:$0xff]
        %v376 = vld [vmem:[%s2 + $0x450] sm:$0xff]
        %v377 = vld [vmem:[%s2 + $0x458] sm:$0xff]
        %v378 = vld [vmem:[%s2 + $0x460] sm:$0xff]
        %v379 = vld [vmem:[%s2 + $0x468] sm:$0xff]
        %v380 = vld [vmem:[%s2 + $0x470] sm:$0xff]
        %v381 = vld [vmem:[%s2 + $0x478] sm:$0xff]
        %v382 = vld [vmem:[%s3] sm:$0xff]
        %v383 = vld [vmem:[%s3 + $0x8] sm:$0x1]
        %v386 = vperm.slane %v382, 0
        %v387 = vperm.slane %v382, 1
        %v388 = vperm.slane %v382, 2
        %v389 = vperm.slane %v382, 3
        %v390 = vperm.slane %v382, 4
        %v391 = vperm.slane %v382, 5
        %v392 = vperm.slane %v382, 6
        %v393 = vperm.slane %v382, 7
        %v394 = vperm.slane %v383, 0
        %v404 = vld [vmem:[%s4] sm:$0x7]
        %v406 = vperm.slane %v404, 0
        %v407 = vperm.slane %v404, 1
        %v408 = vperm.slane %v404, 2
        %v412 = vld [vmem:[%s236] sm:$0xff]
        %413 = vmatpush.msra.mxu0 %v373
        %414 = vmatpush.msra.mxu0 %v364
        %415 = vmatpush.msra.mxu0 %v355
        %416 = vmatpush.msra.mxu0 %v346
        %417 = vmatpush.msra.mxu0 %v337
        %418 = vmatpush.msra.mxu0 %v328
        %419 = vmatpush.msra.mxu0 %v319
        %420 = vmatpush.msra.mxu0 %v310
        %421 = vmatpush.msra.mxu0 %v301
        %422 = vmatpush.msra.mxu0 %v292
        %423 = vmatpush.msra.mxu0 %v283
        %424 = vmatpush.msra.mxu0 %v274
        %425 = vmatpush.msra.mxu0 %v265
        %426 = vmatpush.msra.mxu0 %v256
        %427 = vmatpush.msra.mxu0 %v247
        %428 = vmatpush.msra.mxu0 %v238
        %429 = vmatmul.f32.gmra.mxu0 %v412
        %v430 = vpop.f32.mrf.mxu0
        %v431 = vadd.f32 %v386, %v430
        %432 = vdwg.mxu0
        %433 = vmatpush.msra.mxu0 %v374
        %434 = vmatpush.msra.mxu0 %v365
        %435 = vmatpush.msra.mxu0 %v356
        %436 = vmatpush.msra.mxu0 %v347
        %437 = vmatpush.msra.mxu0 %v338
        %438 = vmatpush.msra.mxu0 %v329
        %439 = vmatpush.msra.mxu0 %v320
        %440 = vmatpush.msra.mxu0 %v311
        %441 = vmatpush.msra.mxu0 %v302
        %442 = vmatpush.msra.mxu0 %v293
        %443 = vmatpush.msra.mxu0 %v284
        %444 = vmatpush.msra.mxu0 %v275
        %445 = vmatpush.msra.mxu0 %v266
        %446 = vmatpush.msra.mxu0 %v257
        %447 = vmatpush.msra.mxu0 %v248
        %448 = vmatpush.msra.mxu0 %v239
        %449 = vmatmul.f32.gmra.mxu0 %v412
        %v450 = vpop.f32.mrf.mxu0
        %v451 = vadd.f32 %v387, %v450
        %452 = vdwg.mxu0
        %453 = vmatpush.msra.mxu0 %v375
        %454 = vmatpush.msra.mxu0 %v366
        %455 = vmatpush.msra.mxu0 %v357
        %456 = vmatpush.msra.mxu0 %v348
        %457 = vmatpush.msra.mxu0 %v339
        %458 = vmatpush.msra.mxu0 %v330
        %459 = vmatpush.msra.mxu0 %v321
        %460 = vmatpush.msra.mxu0 %v312
        %461 = vmatpush.msra.mxu0 %v303
        %462 = vmatpush.msra.mxu0 %v294
        %463 = vmatpush.msra.mxu0 %v285
        %464 = vmatpush.msra.mxu0 %v276
        %465 = vmatpush.msra.mxu0 %v267
        %466 = vmatpush.msra.mxu0 %v258
        %467 = vmatpush.msra.mxu0 %v249
        %468 = vmatpush.msra.mxu0 %v240
        %469 = vmatmul.f32.gmra.mxu0 %v412
        %v470 = vpop.f32.mrf.mxu0
        %v471 = vadd.f32 %v388, %v470
        %472 = vdwg.mxu0
        %473 = vmatpush.msra.mxu0 %v376
        %474 = vmatpush.msra.mxu0 %v367
        %475 = vmatpush.msra.mxu0 %v358
        %476 = vmatpush.msra.mxu0 %v349
        %477 = vmatpush.msra.mxu0 %v340
        %478 = vmatpush.msra.mxu0 %v331
        %479 = vmatpush.msra.mxu0 %v322
        %480 = vmatpush.msra.mxu0 %v313
        %481 = vmatpush.msra.mxu0 %v304
        %482 = vmatpush.msra.mxu0 %v295
        %483 = vmatpush.msra.mxu0 %v286
        %484 = vmatpush.msra.mxu0 %v277
        %485 = vmatpush.msra.mxu0 %v268
        %486 = vmatpush.msra.mxu0 %v259
        %487 = vmatpush.msra.mxu0 %v250
        %488 = vmatpush.msra.mxu0 %v241
        %489 = vmatmul.f32.gmra.mxu0 %v412
        %v490 = vpop.f32.mrf.mxu0
        %v491 = vadd.f32 %v389, %v490
        %492 = vdwg.mxu0
        %493 = vmatpush.msra.mxu0 %v377
        %494 = vmatpush.msra.mxu0 %v368
        %495 = vmatpush.msra.mxu0 %v359
        %496 = vmatpush.msra.mxu0 %v350
        %497 = vmatpush.msra.mxu0 %v341
        %498 = vmatpush.msra.mxu0 %v332
        %499 = vmatpush.msra.mxu0 %v323
        %500 = vmatpush.msra.mxu0 %v314
        %501 = vmatpush.msra.mxu0 %v305
        %502 = vmatpush.msra.mxu0 %v296
        %503 = vmatpush.msra.mxu0 %v287
        %504 = vmatpush.msra.mxu0 %v278
        %505 = vmatpush.msra.mxu0 %v269
        %506 = vmatpush.msra.mxu0 %v260
        %507 = vmatpush.msra.mxu0 %v251
        %508 = vmatpush.msra.mxu0 %v242
        %509 = vmatmul.f32.gmra.mxu0 %v412
        %v510 = vpop.f32.mrf.mxu0
        %v511 = vadd.f32 %v390, %v510
        %512 = vdwg.mxu0
        %513 = vmatpush.msra.mxu0 %v378
        %514 = vmatpush.msra.mxu0 %v369
        %515 = vmatpush.msra.mxu0 %v360
        %516 = vmatpush.msra.mxu0 %v351
        %517 = vmatpush.msra.mxu0 %v342
        %518 = vmatpush.msra.mxu0 %v333
        %519 = vmatpush.msra.mxu0 %v324
        %520 = vmatpush.msra.mxu0 %v315
        %521 = vmatpush.msra.mxu0 %v306
        %522 = vmatpush.msra.mxu0 %v297
        %523 = vmatpush.msra.mxu0 %v288
        %524 = vmatpush.msra.mxu0 %v279
        %525 = vmatpush.msra.mxu0 %v270
        %526 = vmatpush.msra.mxu0 %v261
        %527 = vmatpush.msra.mxu0 %v252
        %528 = vmatpush.msra.mxu0 %v243
        %529 = vmatmul.f32.gmra.mxu0 %v412
        %v530 = vpop.f32.mrf.mxu0
        %v531 = vadd.f32 %v391, %v530
        %532 = vdwg.mxu0
        %533 = vmatpush.msra.mxu0 %v379
        %534 = vmatpush.msra.mxu0 %v370
        %535 = vmatpush.msra.mxu0 %v361
        %536 = vmatpush.msra.mxu0 %v352
        %537 = vmatpush.msra.mxu0 %v343
        %538 = vmatpush.msra.mxu0 %v334
        %539 = vmatpush.msra.mxu0 %v325
        %540 = vmatpush.msra.mxu0 %v316
        %541 = vmatpush.msra.mxu0 %v307
        %542 = vmatpush.msra.mxu0 %v298
        %543 = vmatpush.msra.mxu0 %v289
        %544 = vmatpush.msra.mxu0 %v280
        %545 = vmatpush.msra.mxu0 %v271
        %546 = vmatpush.msra.mxu0 %v262
        %547 = vmatpush.msra.mxu0 %v253
        %548 = vmatpush.msra.mxu0 %v244
        %549 = vmatmul.f32.gmra.mxu0 %v412
        %v550 = vpop.f32.mrf.mxu0
        %v551 = vadd.f32 %v392, %v550
        %552 = vdwg.mxu0
        %553 = vmatpush.msra.mxu0 %v380
        %554 = vmatpush.msra.mxu0 %v371
        %555 = vmatpush.msra.mxu0 %v362
        %556 = vmatpush.msra.mxu0 %v353
        %557 = vmatpush.msra.mxu0 %v344
        %558 = vmatpush.msra.mxu0 %v335
        %559 = vmatpush.msra.mxu0 %v326
        %560 = vmatpush.msra.mxu0 %v317
        %561 = vmatpush.msra.mxu0 %v308
        %562 = vmatpush.msra.mxu0 %v299
        %563 = vmatpush.msra.mxu0 %v290
        %564 = vmatpush.msra.mxu0 %v281
        %565 = vmatpush.msra.mxu0 %v272
        %566 = vmatpush.msra.mxu0 %v263
        %567 = vmatpush.msra.mxu0 %v254
        %568 = vmatpush.msra.mxu0 %v245
        %569 = vmatmul.f32.gmra.mxu0 %v412
        %v570 = vpop.f32.mrf.mxu0
        %v571 = vadd.f32 %v393, %v570
        %572 = vdwg.mxu0
        %573 = vmatpush.msra.mxu0 %v381
        %574 = vmatpush.msra.mxu0 %v372
        %575 = vmatpush.msra.mxu0 %v363
        %576 = vmatpush.msra.mxu0 %v354
        %577 = vmatpush.msra.mxu0 %v345
        %578 = vmatpush.msra.mxu0 %v336
        %579 = vmatpush.msra.mxu0 %v327
        %580 = vmatpush.msra.mxu0 %v318
        %581 = vmatpush.msra.mxu0 %v309
        %582 = vmatpush.msra.mxu0 %v300
        %583 = vmatpush.msra.mxu0 %v291
        %584 = vmatpush.msra.mxu0 %v282
        %585 = vmatpush.msra.mxu0 %v273
        %586 = vmatpush.msra.mxu0 %v264
        %587 = vmatpush.msra.mxu0 %v255
        %588 = vmatpush.msra.mxu0 %v246
        %589 = vmatmul.f32.gmra.mxu0 %v412
        %v590 = vpop.f32.mrf.mxu0
        %v591 = vadd.f32 %v394, %v590
        %592 = vdwg.mxu0
        %594 = vrot.lane.b32.xlu0 %v237, 120
        %v595 = vpop.permute.xlu0 %594
        %vm596 = vcmask 64512
        %v597 = vsel %vm596, %v595, 0
        %599 = vmatpush.msra.mxu0 0.0
        %600 = vmatpush.msra.mxu0 0.0
        %601 = vmatpush.msra.mxu0 0.0
        %602 = vmatpush.msra.mxu0 0.0
        %603 = vmatpush.msra.mxu0 0.0
        %604 = vmatpush.msra.mxu0 0.0
        %605 = vmatpush.msra.mxu0 0.0
        %606 = vmatpush.msra.mxu0 0.0
        %607 = vmatpush.msra.mxu0 0.0
        %608 = vmatpush.msra.mxu0 0.0
        %609 = vmatpush.msra.mxu0 0.0
        %610 = vmatpush.msra.mxu0 0.0
        %611 = vmatpush.msra.mxu0 0.0
        %612 = vmatpush.msra.mxu0 0.0
        %613 = vmatpush.msra.mxu0 0.0
        %614 = vmatpush.msra.mxu0 %v491
        %615 = vmatmul.f32.gmra.mxu0 %v597
        %v616 = vpop.f32.mrf.mxu0
        %v617 = vadd.f32 0.0, %v616
        %618 = vdwg.mxu0
        %619 = vmatpush.msra.mxu0 0.0
        %620 = vmatpush.msra.mxu0 0.0
        %621 = vmatpush.msra.mxu0 0.0
        %622 = vmatpush.msra.mxu0 0.0
        %623 = vmatpush.msra.mxu0 0.0
        %624 = vmatpush.msra.mxu0 0.0
        %625 = vmatpush.msra.mxu0 0.0
        %626 = vmatpush.msra.mxu0 0.0
        %627 = vmatpush.msra.mxu0 0.0
        %628 = vmatpush.msra.mxu0 0.0
        %629 = vmatpush.msra.mxu0 0.0
        %630 = vmatpush.msra.mxu0 0.0
        %631 = vmatpush.msra.mxu0 0.0
        %632 = vmatpush.msra.mxu0 0.0
        %633 = vmatpush.msra.mxu0 0.0
        %634 = vmatpush.msra.mxu0 %v511
        %635 = vmatmul.f32.gmra.mxu0 %v597
        %v636 = vpop.f32.mrf.mxu0
        %v637 = vadd.f32 0.0, %v636
        %638 = vdwg.mxu0
        %639 = vmatpush.msra.mxu0 0.0
        %640 = vmatpush.msra.mxu0 0.0
        %641 = vmatpush.msra.mxu0 0.0
        %642 = vmatpush.msra.mxu0 0.0
        %643 = vmatpush.msra.mxu0 0.0
        %644 = vmatpush.msra.mxu0 0.0
        %645 = vmatpush.msra.mxu0 0.0
        %646 = vmatpush.msra.mxu0 0.0
        %647 = vmatpush.msra.mxu0 0.0
        %648 = vmatpush.msra.mxu0 0.0
        %649 = vmatpush.msra.mxu0 0.0
        %650 = vmatpush.msra.mxu0 0.0
        %651 = vmatpush.msra.mxu0 0.0
        %652 = vmatpush.msra.mxu0 0.0
        %653 = vmatpush.msra.mxu0 0.0
        %654 = vmatpush.msra.mxu0 %v531
        %655 = vmatmul.f32.gmra.mxu0 %v597
        %v656 = vpop.f32.mrf.mxu0
        %v657 = vadd.f32 0.0, %v656
        %658 = vdwg.mxu0
        %v659 = vsel %vm596, %v237, 0
        %661 = vmatpush.msra.mxu0 0.0
        %662 = vmatpush.msra.mxu0 0.0
        %663 = vmatpush.msra.mxu0 0.0
        %664 = vmatpush.msra.mxu0 0.0
        %665 = vmatpush.msra.mxu0 0.0
        %666 = vmatpush.msra.mxu0 0.0
        %667 = vmatpush.msra.mxu0 0.0
        %668 = vmatpush.msra.mxu0 0.0
        %669 = vmatpush.msra.mxu0 0.0
        %670 = vmatpush.msra.mxu0 0.0
        %671 = vmatpush.msra.mxu0 0.0
        %672 = vmatpush.msra.mxu0 0.0
        %673 = vmatpush.msra.mxu0 0.0
        %674 = vmatpush.msra.mxu0 0.0
        %675 = vmatpush.msra.mxu0 0.0
        %676 = vmatpush.msra.mxu0 %v431
        %677 = vmatmul.f32.gmra.mxu0 %v659
        %v678 = vpop.f32.mrf.mxu0
        %v679 = vadd.f32 %v617, %v678
        %680 = vdwg.mxu0
        %681 = vmatpush.msra.mxu0 0.0
        %682 = vmatpush.msra.mxu0 0.0
        %683 = vmatpush.msra.mxu0 0.0
        %684 = vmatpush.msra.mxu0 0.0
        %685 = vmatpush.msra.mxu0 0.0
        %686 = vmatpush.msra.mxu0 0.0
        %687 = vmatpush.msra.mxu0 0.0
        %688 = vmatpush.msra.mxu0 0.0
        %689 = vmatpush.msra.mxu0 0.0
        %690 = vmatpush.msra.mxu0 0.0
        %691 = vmatpush.msra.mxu0 0.0
        %692 = vmatpush.msra.mxu0 0.0
        %693 = vmatpush.msra.mxu0 0.0
        %694 = vmatpush.msra.mxu0 0.0
        %695 = vmatpush.msra.mxu0 0.0
        %696 = vmatpush.msra.mxu0 %v451
        %697 = vmatmul.f32.gmra.mxu0 %v659
        %v698 = vpop.f32.mrf.mxu0
        %v699 = vadd.f32 %v637, %v698
        %700 = vdwg.mxu0
        %701 = vmatpush.msra.mxu0 0.0
        %702 = vmatpush.msra.mxu0 0.0
        %703 = vmatpush.msra.mxu0 0.0
        %704 = vmatpush.msra.mxu0 0.0
        %705 = vmatpush.msra.mxu0 0.0
        %706 = vmatpush.msra.mxu0 0.0
        %707 = vmatpush.msra.mxu0 0.0
        %708 = vmatpush.msra.mxu0 0.0
        %709 = vmatpush.msra.mxu0 0.0
        %710 = vmatpush.msra.mxu0 0.0
        %711 = vmatpush.msra.mxu0 0.0
        %712 = vmatpush.msra.mxu0 0.0
        %713 = vmatpush.msra.mxu0 0.0
        %714 = vmatpush.msra.mxu0 0.0
        %715 = vmatpush.msra.mxu0 0.0
        %716 = vmatpush.msra.mxu0 %v471
        %717 = vmatmul.f32.gmra.mxu0 %v659
        %v718 = vpop.f32.mrf.mxu0
        %v719 = vadd.f32 %v657, %v718
        %720 = vdwg.mxu0
        %v721 = vadd.f32 %v679, %v406
        %v722 = vadd.f32 %v699, %v407
        %v723 = vadd.f32 %v719, %v408
        %v724 = vadd.f32 %v721, %v551
        %v725 = vxor.u32 %v724, 2147483648
        %v726 = vmul.f32 %v725, 1.442695
        %v727 = vpow.pop %v726
        %v728 = vadd.f32 %v727, 1.0
        %v729 = vrcp.pop %v728
        %v730 = vmul.f32 %v728, %v729
        %v731 = vsub.f32 1.0, %v730
        %v732 = vmul.f32 %v729, %v731
        %v733 = vadd.f32 %v729, %v732
        %vm734 = vweird.f32 %v728
        %vm735 = vweird.f32 %v729
        %vm736 = vmor %vm734, %vm735
        %v737 = vsel %vm736, %v729, %v733
        %v738 = vand.u32 2147483647, %v728
        %vm739 = vcmp.eq.f32.partialorder %v738, 8.507059e+37
        %v740 = vand.u32 %v728, 2147483648
        %v741 = vor.u32 1.1754944e-38, %v740
        %v742 = vsel %vm739, %v741, %v737
        %v743 = vmul.f32 1.0, %v742
        %v744 = vadd.f32 %v722, %v571
        %v745 = vxor.u32 %v744, 2147483648
        %v746 = vmul.f32 %v745, 1.442695
        %v747 = vpow.pop %v746
        %v748 = vadd.f32 %v747, 1.0
        %v749 = vrcp.pop %v748
        %v750 = vmul.f32 %v748, %v749
        %v751 = vsub.f32 1.0, %v750
        %v752 = vmul.f32 %v749, %v751
        %v753 = vadd.f32 %v749, %v752
        %vm754 = vweird.f32 %v748
        %vm755 = vweird.f32 %v749
        %vm756 = vmor %vm754, %vm755
        %v757 = vsel %vm756, %v749, %v753
        %v758 = vand.u32 2147483647, %v748
        %vm759 = vcmp.eq.f32.partialorder %v758, 8.507059e+37
        %v760 = vand.u32 %v748, 2147483648
        %v761 = vor.u32 1.1754944e-38, %v760
        %v762 = vsel %vm759, %v761, %v757
        %v763 = vmul.f32 1.0, %v762
        %v764 = vmul.f32 %v743, %v591
        %v765 = vadd.f32 %v723, %v764
        %v766 = vtanh.pop %v765
        %v767 = vsub.f32 %v412, %v766
        %v768 = vmul.f32 %v763, %v767
        %v769 = vsub.f32 %v412, %v768
        %770 = vmatpush.msra.mxu0 %v373
        %771 = vmatpush.msra.mxu0 %v364
        %772 = vmatpush.msra.mxu0 %v355
        %773 = vmatpush.msra.mxu0 %v346
        %774 = vmatpush.msra.mxu0 %v337
        %775 = vmatpush.msra.mxu0 %v328
        %776 = vmatpush.msra.mxu0 %v319
        %777 = vmatpush.msra.mxu0 %v310
        %778 = vmatpush.msra.mxu0 %v301
        %779 = vmatpush.msra.mxu0 %v292
        %780 = vmatpush.msra.mxu0 %v283
        %781 = vmatpush.msra.mxu0 %v274
        %782 = vmatpush.msra.mxu0 %v265
        %783 = vmatpush.msra.mxu0 %v256
        %784 = vmatpush.msra.mxu0 %v247
        %785 = vmatpush.msra.mxu0 %v238
        %786 = vmatmul.f32.gmra.mxu0 %v769
        %v787 = vpop.f32.mrf.mxu0
        %v788 = vadd.f32 %v386, %v787
        %789 = vdwg.mxu0
        %790 = vmatpush.msra.mxu0 %v374
        %791 = vmatpush.msra.mxu0 %v365
        %792 = vmatpush.msra.mxu0 %v356
        %793 = vmatpush.msra.mxu0 %v347
        %794 = vmatpush.msra.mxu0 %v338
        %795 = vmatpush.msra.mxu0 %v329
        %796 = vmatpush.msra.mxu0 %v320
        %797 = vmatpush.msra.mxu0 %v311
        %798 = vmatpush.msra.mxu0 %v302
        %799 = vmatpush.msra.mxu0 %v293
        %800 = vmatpush.msra.mxu0 %v284
        %801 = vmatpush.msra.mxu0 %v275
        %802 = vmatpush.msra.mxu0 %v266
        %803 = vmatpush.msra.mxu0 %v257
        %804 = vmatpush.msra.mxu0 %v248
        %805 = vmatpush.msra.mxu0 %v239
        %806 = vmatmul.f32.gmra.mxu0 %v769
        %v807 = vpop.f32.mrf.mxu0
        %v808 = vadd.f32 %v387, %v807
        %809 = vdwg.mxu0
        %810 = vmatpush.msra.mxu0 %v375
        %811 = vmatpush.msra.mxu0 %v366
        %812 = vmatpush.msra.mxu0 %v357
        %813 = vmatpush.msra.mxu0 %v348
        %814 = vmatpush.msra.mxu0 %v339
        %815 = vmatpush.msra.mxu0 %v330
        %816 = vmatpush.msra.mxu0 %v321
        %817 = vmatpush.msra.mxu0 %v312
        %818 = vmatpush.msra.mxu0 %v303
        %819 = vmatpush.msra.mxu0 %v294
        %820 = vmatpush.msra.mxu0 %v285
        %821 = vmatpush.msra.mxu0 %v276
        %822 = vmatpush.msra.mxu0 %v267
        %823 = vmatpush.msra.mxu0 %v258
        %824 = vmatpush.msra.mxu0 %v249
        %825 = vmatpush.msra.mxu0 %v240
        %826 = vmatmul.f32.gmra.mxu0 %v769
        %v827 = vpop.f32.mrf.mxu0
        %v828 = vadd.f32 %v388, %v827
        %829 = vdwg.mxu0
        %830 = vmatpush.msra.mxu0 %v376
        %831 = vmatpush.msra.mxu0 %v367
        %832 = vmatpush.msra.mxu0 %v358
        %833 = vmatpush.msra.mxu0 %v349
        %834 = vmatpush.msra.mxu0 %v340
        %835 = vmatpush.msra.mxu0 %v331
        %836 = vmatpush.msra.mxu0 %v322
        %837 = vmatpush.msra.mxu0 %v313
        %838 = vmatpush.msra.mxu0 %v304
        %839 = vmatpush.msra.mxu0 %v295
        %840 = vmatpush.msra.mxu0 %v286
        %841 = vmatpush.msra.mxu0 %v277
        %842 = vmatpush.msra.mxu0 %v268
        %843 = vmatpush.msra.mxu0 %v259
        %844 = vmatpush.msra.mxu0 %v250
        %845 = vmatpush.msra.mxu0 %v241
        %846 = vmatmul.f32.gmra.mxu0 %v769
        %v847 = vpop.f32.mrf.mxu0
        %v848 = vadd.f32 %v389, %v847
        %849 = vdwg.mxu0
        %850 = vmatpush.msra.mxu0 %v377
        %851 = vmatpush.msra.mxu0 %v368
        %852 = vmatpush.msra.mxu0 %v359
        %853 = vmatpush.msra.mxu0 %v350
        %854 = vmatpush.msra.mxu0 %v341
        %855 = vmatpush.msra.mxu0 %v332
        %856 = vmatpush.msra.mxu0 %v323
        %857 = vmatpush.msra.mxu0 %v314
        %858 = vmatpush.msra.mxu0 %v305
        %859 = vmatpush.msra.mxu0 %v296
        %860 = vmatpush.msra.mxu0 %v287
        %861 = vmatpush.msra.mxu0 %v278
        %862 = vmatpush.msra.mxu0 %v269
        %863 = vmatpush.msra.mxu0 %v260
        %864 = vmatpush.msra.mxu0 %v251
        %865 = vmatpush.msra.mxu0 %v242
        %866 = vmatmul.f32.gmra.mxu0 %v769
        %v867 = vpop.f32.mrf.mxu0
        %v868 = vadd.f32 %v390, %v867
        %869 = vdwg.mxu0
        %870 = vmatpush.msra.mxu0 %v378
        %871 = vmatpush.msra.mxu0 %v369
        %872 = vmatpush.msra.mxu0 %v360
        %873 = vmatpush.msra.mxu0 %v351
        %874 = vmatpush.msra.mxu0 %v342
        %875 = vmatpush.msra.mxu0 %v333
        %876 = vmatpush.msra.mxu0 %v324
        %877 = vmatpush.msra.mxu0 %v315
        %878 = vmatpush.msra.mxu0 %v306
        %879 = vmatpush.msra.mxu0 %v297
        %880 = vmatpush.msra.mxu0 %v288
        %881 = vmatpush.msra.mxu0 %v279
        %882 = vmatpush.msra.mxu0 %v270
        %883 = vmatpush.msra.mxu0 %v261
        %884 = vmatpush.msra.mxu0 %v252
        %885 = vmatpush.msra.mxu0 %v243
        %886 = vmatmul.f32.gmra.mxu0 %v769
        %v887 = vpop.f32.mrf.mxu0
        %v888 = vadd.f32 %v391, %v887
        %889 = vdwg.mxu0
        %890 = vmatpush.msra.mxu0 %v379
        %891 = vmatpush.msra.mxu0 %v370
        %892 = vmatpush.msra.mxu0 %v361
        %893 = vmatpush.msra.mxu0 %v352
        %894 = vmatpush.msra.mxu0 %v343
        %895 = vmatpush.msra.mxu0 %v334
        %896 = vmatpush.msra.mxu0 %v325
        %897 = vmatpush.msra.mxu0 %v316
        %898 = vmatpush.msra.mxu0 %v307
        %899 = vmatpush.msra.mxu0 %v298
        %900 = vmatpush.msra.mxu0 %v289
        %901 = vmatpush.msra.mxu0 %v280
        %902 = vmatpush.msra.mxu0 %v271
        %903 = vmatpush.msra.mxu0 %v262
        %904 = vmatpush.msra.mxu0 %v253
        %905 = vmatpush.msra.mxu0 %v244
        %906 = vmatmul.f32.gmra.mxu0 %v769
        %v907 = vpop.f32.mrf.mxu0
        %v908 = vadd.f32 %v392, %v907
        %909 = vdwg.mxu0
        %910 = vmatpush.msra.mxu0 %v380
        %911 = vmatpush.msra.mxu0 %v371
        %912 = vmatpush.msra.mxu0 %v362
        %913 = vmatpush.msra.mxu0 %v353
        %914 = vmatpush.msra.mxu0 %v344
        %915 = vmatpush.msra.mxu0 %v335
        %916 = vmatpush.msra.mxu0 %v326
        %917 = vmatpush.msra.mxu0 %v317
        %918 = vmatpush.msra.mxu0 %v308
        %919 = vmatpush.msra.mxu0 %v299
        %920 = vmatpush.msra.mxu0 %v290
        %921 = vmatpush.msra.mxu0 %v281
        %922 = vmatpush.msra.mxu0 %v272
        %923 = vmatpush.msra.mxu0 %v263
        %924 = vmatpush.msra.mxu0 %v254
        %925 = vmatpush.msra.mxu0 %v245
        %926 = vmatmul.f32.gmra.mxu0 %v769
        %v927 = vpop.f32.mrf.mxu0
        %v928 = vadd.f32 %v393, %v927
        %929 = vdwg.mxu0
        %930 = vmatpush.msra.mxu0 %v381
        %931 = vmatpush.msra.mxu0 %v372
        %932 = vmatpush.msra.mxu0 %v363
        %933 = vmatpush.msra.mxu0 %v354
        %934 = vmatpush.msra.mxu0 %v345
        %935 = vmatpush.msra.mxu0 %v336
        %936 = vmatpush.msra.mxu0 %v327
        %937 = vmatpush.msra.mxu0 %v318
        %938 = vmatpush.msra.mxu0 %v309
        %939 = vmatpush.msra.mxu0 %v300
        %940 = vmatpush.msra.mxu0 %v291
        %941 = vmatpush.msra.mxu0 %v282
        %942 = vmatpush.msra.mxu0 %v273
        %943 = vmatpush.msra.mxu0 %v264
        %944 = vmatpush.msra.mxu0 %v255
        %945 = vmatpush.msra.mxu0 %v246
        %946 = vmatmul.f32.gmra.mxu0 %v769
        %v947 = vpop.f32.mrf.mxu0
        %v948 = vadd.f32 %v394, %v947
        %949 = vdwg.mxu0
        %950 = vmatpush.msra.mxu0 0.0
        %951 = vmatpush.msra.mxu0 0.0
        %952 = vmatpush.msra.mxu0 0.0
        %953 = vmatpush.msra.mxu0 0.0
        %954 = vmatpush.msra.mxu0 0.0
        %955 = vmatpush.msra.mxu0 0.0
        %956 = vmatpush.msra.mxu0 0.0
        %957 = vmatpush.msra.mxu0 0.0
        %958 = vmatpush.msra.mxu0 0.0
        %959 = vmatpush.msra.mxu0 0.0
        %960 = vmatpush.msra.mxu0 0.0
        %961 = vmatpush.msra.mxu0 0.0
        %962 = vmatpush.msra.mxu0 0.0
        %963 = vmatpush.msra.mxu0 0.0
        %964 = vmatpush.msra.mxu0 0.0
        %965 = vmatpush.msra.mxu0 %v848
        %966 = vmatmul.f32.gmra.mxu0 %v597
        %v967 = vpop.f32.mrf.mxu0
        %v968 = vadd.f32 0.0, %v967
        %969 = vdwg.mxu0
        %970 = vmatpush.msra.mxu0 0.0
        %971 = vmatpush.msra.mxu0 0.0
        %972 = vmatpush.msra.mxu0 0.0
        %973 = vmatpush.msra.mxu0 0.0
        %974 = vmatpush.msra.mxu0 0.0
        %975 = vmatpush.msra.mxu0 0.0
        %976 = vmatpush.msra.mxu0 0.0
        %977 = vmatpush.msra.mxu0 0.0
        %978 = vmatpush.msra.mxu0 0.0
        %979 = vmatpush.msra.mxu0 0.0
        %980 = vmatpush.msra.mxu0 0.0
        %981 = vmatpush.msra.mxu0 0.0
        %982 = vmatpush.msra.mxu0 0.0
        %983 = vmatpush.msra.mxu0 0.0
        %984 = vmatpush.msra.mxu0 0.0
        %985 = vmatpush.msra.mxu0 %v868
        %986 = vmatmul.f32.gmra.mxu0 %v597
        %v987 = vpop.f32.mrf.mxu0
        %v988 = vadd.f32 0.0, %v987
        %989 = vdwg.mxu0
        %990 = vmatpush.msra.mxu0 0.0
        %991 = vmatpush.msra.mxu0 0.0
        %992 = vmatpush.msra.mxu0 0.0
        %993 = vmatpush.msra.mxu0 0.0
        %994 = vmatpush.msra.mxu0 0.0
        %995 = vmatpush.msra.mxu0 0.0
        %996 = vmatpush.msra.mxu0 0.0
        %997 = vmatpush.msra.mxu0 0.0
        %998 = vmatpush.msra.mxu0 0.0
        %999 = vmatpush.msra.mxu0 0.0
        %1000 = vmatpush.msra.mxu0 0.0
        %1001 = vmatpush.msra.mxu0 0.0
        %1002 = vmatpush.msra.mxu0 0.0
        %1003 = vmatpush.msra.mxu0 0.0
        %1004 = vmatpush.msra.mxu0 0.0
        %1005 = vmatpush.msra.mxu0 %v888
        %1006 = vmatmul.f32.gmra.mxu0 %v597
        %v1007 = vpop.f32.mrf.mxu0
        %v1008 = vadd.f32 0.0, %v1007
        %1009 = vdwg.mxu0
        %1010 = vmatpush.msra.mxu0 0.0
        %1011 = vmatpush.msra.mxu0 0.0
        %1012 = vmatpush.msra.mxu0 0.0
        %1013 = vmatpush.msra.mxu0 0.0
        %1014 = vmatpush.msra.mxu0 0.0
        %1015 = vmatpush.msra.mxu0 0.0
        %1016 = vmatpush.msra.mxu0 0.0
        %1017 = vmatpush.msra.mxu0 0.0
        %1018 = vmatpush.msra.mxu0 0.0
        %1019 = vmatpush.msra.mxu0 0.0
        %1020 = vmatpush.msra.mxu0 0.0
        %1021 = vmatpush.msra.mxu0 0.0
        %1022 = vmatpush.msra.mxu0 0.0
        %1023 = vmatpush.msra.mxu0 0.0
        %1024 = vmatpush.msra.mxu0 0.0
        %1025 = vmatpush.msra.mxu0 %v788
        %1026 = vmatmul.f32.gmra.mxu0 %v659
        %v1027 = vpop.f32.mrf.mxu0
        %v1028 = vadd.f32 %v968, %v1027
        %1029 = vdwg.mxu0
        %1030 = vmatpush.msra.mxu0 0.0
        %1031 = vmatpush.msra.mxu0 0.0
        %1032 = vmatpush.msra.mxu0 0.0
        %1033 = vmatpush.msra.mxu0 0.0
        %1034 = vmatpush.msra.mxu0 0.0
        %1035 = vmatpush.msra.mxu0 0.0
        %1036 = vmatpush.msra.mxu0 0.0
        %1037 = vmatpush.msra.mxu0 0.0
        %1038 = vmatpush.msra.mxu0 0.0
        %1039 = vmatpush.msra.mxu0 0.0
        %1040 = vmatpush.msra.mxu0 0.0
        %1041 = vmatpush.msra.mxu0 0.0
        %1042 = vmatpush.msra.mxu0 0.0
        %1043 = vmatpush.msra.mxu0 0.0
        %1044 = vmatpush.msra.mxu0 0.0
        %1045 = vmatpush.msra.mxu0 %v808
        %1046 = vmatmul.f32.gmra.mxu0 %v659
        %v1047 = vpop.f32.mrf.mxu0
        %v1048 = vadd.f32 %v988, %v1047
        %1049 = vdwg.mxu0
        %1050 = vmatpush.msra.mxu0 0.0
        %1051 = vmatpush.msra.mxu0 0.0
        %1052 = vmatpush.msra.mxu0 0.0
        %1053 = vmatpush.msra.mxu0 0.0
        %1054 = vmatpush.msra.mxu0 0.0
        %1055 = vmatpush.msra.mxu0 0.0
        %1056 = vmatpush.msra.mxu0 0.0
        %1057 = vmatpush.msra.mxu0 0.0
        %1058 = vmatpush.msra.mxu0 0.0
        %1059 = vmatpush.msra.mxu0 0.0
        %1060 = vmatpush.msra.mxu0 0.0
        %1061 = vmatpush.msra.mxu0 0.0
        %1062 = vmatpush.msra.mxu0 0.0
        %1063 = vmatpush.msra.mxu0 0.0
        %1064 = vmatpush.msra.mxu0 0.0
        %1065 = vmatpush.msra.mxu0 %v828
        %1066 = vmatmul.f32.gmra.mxu0 %v659
        %v1067 = vpop.f32.mrf.mxu0
        %v1068 = vadd.f32 %v1008, %v1067
        %1069 = vdwg.mxu0
        %v1070 = vadd.f32 %v1028, %v406
        %v1071 = vadd.f32 %v1048, %v407
        %v1072 = vadd.f32 %v1068, %v408
        %v1073 = vadd.f32 %v1070, %v908
        %v1074 = vxor.u32 %v1073, 2147483648
        %v1075 = vmul.f32 %v1074, 1.442695
        %v1076 = vpow.pop %v1075
        %v1077 = vadd.f32 %v1076, 1.0
        %v1078 = vrcp.pop %v1077
        %v1079 = vmul.f32 %v1077, %v1078
        %v1080 = vsub.f32 1.0, %v1079
        %v1081 = vmul.f32 %v1078, %v1080
        %v1082 = vadd.f32 %v1078, %v1081
        %vm1083 = vweird.f32 %v1077
        %vm1084 = vweird.f32 %v1078
        %vm1085 = vmor %vm1083, %vm1084
        %v1086 = vsel %vm1085, %v1078, %v1082
        %v1087 = vand.u32 2147483647, %v1077
        %vm1088 = vcmp.eq.f32.partialorder %v1087, 8.507059e+37
        %v1089 = vand.u32 %v1077, 2147483648
        %v1090 = vor.u32 1.1754944e-38, %v1089
        %v1091 = vsel %vm1088, %v1090, %v1086
        %v1092 = vmul.f32 1.0, %v1091
        %v1093 = vadd.f32 %v1071, %v928
        %v1094 = vxor.u32 %v1093, 2147483648
        %v1095 = vmul.f32 %v1094, 1.442695
        %v1096 = vpow.pop %v1095
        %v1097 = vadd.f32 %v1096, 1.0
        %v1098 = vrcp.pop %v1097
        %v1099 = vmul.f32 %v1097, %v1098
        %v1100 = vsub.f32 1.0, %v1099
        %v1101 = vmul.f32 %v1098, %v1100
        %v1102 = vadd.f32 %v1098, %v1101
        %vm1103 = vweird.f32 %v1097
        %vm1104 = vweird.f32 %v1098
        %vm1105 = vmor %vm1103, %vm1104
        %v1106 = vsel %vm1105, %v1098, %v1102
        %v1107 = vand.u32 2147483647, %v1097
        %vm1108 = vcmp.eq.f32.partialorder %v1107, 8.507059e+37
        %v1109 = vand.u32 %v1097, 2147483648
        %v1110 = vor.u32 1.1754944e-38, %v1109
        %v1111 = vsel %vm1108, %v1110, %v1106
        %v1112 = vmul.f32 1.0, %v1111
        %v1113 = vmul.f32 %v1092, %v948
        %v1114 = vadd.f32 %v1072, %v1113
        %v1115 = vtanh.pop %v1114
        %v1116 = vsub.f32 %v769, %v1115
        %v1117 = vmul.f32 %v1112, %v1116
        %v1118 = vsub.f32 %v769, %v1117
        %1119 = vst [vmem:[%s228] sm:$0xff] %v1118
        %s1120 = sand.u32 %s142, 1
        %s1121 = scalar_lea.sflag [#allocation3], %s1120
        %s1122 = sand.u32 %s142, 1
        %s1123 = smul.addr %s1122, 8
        %s1124 = scalar_lea.vmem [#allocation2], %s1123
        // Predicated region
        $region41: #{gnn_forward.1} parent=39 // pred_check
          %p1125 = pneg %p152
        $region42: #{gnn_forward.1} parent=39 // pred_check_branch
          %1127 = sbr.rel (%p1125) target = $region44
        $region43: #{gnn_forward.1} parent=39 // pred_region
          %1129 = vsyncadd %s1121, 0
          %s1130 = smul.addr %s19, 8
          %s1131 = scalar_lea.hbm %s5, %s1130
          %s1133 = sshll.u32 %s1124, 4
          %s1134 = int_to_ptr.vmem [resolvable:$true] %s1133
          %s1135 = sshll.u32 %s1131, 4
          %s1136 = int_to_ptr.hbm [resolvable:$true] %s1135
          %1138 = dma.vmem_to_hbm [thread:$0]  %s1134, 128, %s1136, %s1121
        $region44: #{gnn_forward.1} parent=39 // pred_fallthru
          _
      $region40: #{gnn_forward.1} parent=5 // pred_fallthru
        _
      %p1139 = scmp.le.s32.totalorder 2, %s14
      // Predicated region
      $region45: #{gnn_forward.1} parent=5 // pred_check
        %p1140 = pneg %p1139
      $region46: #{gnn_forward.1} parent=5 // pred_check_branch
        %1142 = sbr.rel (%p1140) target = $region48
      $region47: #{gnn_forward.1} parent=5 // pred_region
        %s1143 = ssub.s32 %s14, 2
        // Predicated region
        $region49: #{gnn_forward.1} parent=47 // pred_check
          %p1144 = pneg %p158
        $region50: #{gnn_forward.1} parent=47 // pred_check_branch
          %1146 = sbr.rel (%p1144) target = $region52
        $region51: #{gnn_forward.1} parent=47 // pred_region
          %s1147 = sand.u32 %s143, 1
          %s1148 = scalar_lea.sflag [#allocation3], %s1147
          %s1149 = sand.u32 %s143, 1
          %s1150 = smul.addr %s1149, 8
          %s1151 = scalar_lea.vmem [#allocation2], %s1150
          %1153 = dma.done %s1148, 128
        $region52: #{gnn_forward.1} parent=47 // pred_fallthru
          _
      $region48: #{gnn_forward.1} parent=5 // pred_fallthru
        _
    $region6: #{gnn_forward.1} parent=1 // loop_footer
      %s18 = sadd.s32 1, %s14
    $region7: #{gnn_forward.1} parent=1 // loop_footer_branch
      %13 = sbr.rel target = $region3
    $region8: #{gnn_forward.1} parent=1 // loop_exit
      _
    %1154 = vsyncpa [#allocation3], 1
    %s1155 = scalar_lea.sflag [#allocation3], 1
    %1156 = vsyncpa %s1155, 1

</llo_original>
